<compile_context>
chip_gen: v6e
topology: v6e:2x2x1
jax: 0.10.0
libtpu: 0.0.40
codegen_flags: <defaults>
</compile_context>

<pallas_src>
import jax
import jax.numpy as jnp
from jax.experimental import pallas as pl
from jax.experimental.pallas import tpu as pltpu


def _round_up(x, m):
    return ((x + m - 1) // m) * m


def pack_params(w1, b1, w2, b2, w3, b3):
    """Pack PyTorch-layout params (W: (out,in), b: (out,)) into one 2D slab.

    Layout (rows = max hidden width, columns):
      [0:in_f]              W1  (h1, in_f)
      [in_f:in_f+h1]        W2  (h2, h1)
      [in_f+h1:in_f+h1+h2]  W3  (out_f, h2)
      next 3 columns        b1, b2, b3 (one column each)
    Unused entries are zero.
    """
    h1, in_f = w1.shape
    h2 = w2.shape[0]
    out_f = w3.shape[0]
    H = max(h1, h2, out_f)
    cols = in_f + h1 + h2 + 3
    p = jnp.zeros((H, cols), jnp.float32)
    c = 0
    p = p.at[:h1, c:c + in_f].set(w1.astype(jnp.float32)); c += in_f
    p = p.at[:h2, c:c + h1].set(w2.astype(jnp.float32));   c += h1
    p = p.at[:out_f, c:c + h2].set(w3.astype(jnp.float32)); c += h2
    p = p.at[:h1, c].set(b1.astype(jnp.float32));  c += 1
    p = p.at[:h2, c].set(b2.astype(jnp.float32));  c += 1
    p = p.at[:out_f, c].set(b3.astype(jnp.float32))
    return p


def mlp_forward(x, w1, b1, w2, b2, w3, b3, *, block_b=4096):
    """x: (B, in_features) f32.  Weights in PyTorch layout (out, in), b: (out,)."""
    B, in_f = x.shape
    h1 = w1.shape[0]
    h2 = w2.shape[0]
    out_f = w3.shape[0]
    H = max(h1, h2, out_f)

    params = pack_params(w1, b1, w2, b2, w3, b3)  # (H, in_f + h1 + h2 + 3)
    n_cols = params.shape[1]

    # Batch on the lane axis: tile must be a multiple of 128 lanes.
    LANE = 128
    TB = min(block_b, _round_up(B, LANE))
    TB = _round_up(TB, LANE)
    num_tiles = pl.cdiv(B, TB)
    Bp = num_tiles * TB

    xT = jnp.transpose(x).astype(jnp.float32)        # (in_f, B)
    if Bp != B:
        xT = jnp.pad(xT, ((0, 0), (0, Bp - B)))      # (in_f, Bp)

    # Static column offsets inside the packed param slab.
    off_w1 = 0
    off_w2 = in_f
    off_w3 = in_f + h1
    off_b = in_f + h1 + h2

    def kernel(x_ref, p_ref, o_ref):
        p = p_ref[...]                                # (H, n_cols), VMEM-resident
        w1_ = p[:h1, off_w1:off_w1 + in_f]            # (h1, in_f)
        w2_ = p[:h2, off_w2:off_w2 + h1]              # (h2, h1)
        w3_ = p[:out_f, off_w3:off_w3 + h2]           # (out_f, h2)
        b1_ = p[:h1, off_b + 0:off_b + 1]             # (h1, 1)
        b2_ = p[:h2, off_b + 1:off_b + 2]             # (h2, 1)
        b3_ = p[:out_f, off_b + 2:off_b + 3]          # (out_f, 1)

        xt = x_ref[...]                               # (in_f, TB) lane-dense
        h = jnp.dot(w1_, xt, preferred_element_type=jnp.float32)
        h = jnp.maximum(h + b1_, 0.0)                 # (h1, TB)
        h = jnp.dot(w2_, h, preferred_element_type=jnp.float32)
        h = jnp.maximum(h + b2_, 0.0)                 # (h2, TB)
        y = jnp.dot(w3_, h, preferred_element_type=jnp.float32)
        o_ref[...] = (y + b3_).astype(o_ref.dtype)    # (out_f, TB) lane-dense

    flops = 2 * Bp * (in_f * h1 + h1 * h2 + h2 * out_f)
    bytes_accessed = 4 * (Bp * (in_f + out_f) + params.size)
    cost = pl.CostEstimate(flops=flops, transcendentals=0,
                           bytes_accessed=bytes_accessed)

    yT = pl.pallas_call(
        kernel,
        out_shape=jax.ShapeDtypeStruct((out_f, Bp), jnp.float32),
        grid=(num_tiles,),
        in_specs=[
            # Activations: one (in_f, TB) batch tile per grid step (pipelined).
            pl.BlockSpec((in_f, TB), lambda i: (0, i)),
            # Packed params: constant block index -> single DMA, stays resident.
            pl.BlockSpec((H, n_cols), lambda i: (0, 0)),
        ],
        out_specs=pl.BlockSpec((out_f, TB), lambda i: (0, i)),
        compiler_params=pltpu.CompilerParams(
            # Batch tiles are independent -> shard across TCs on v7x megacore.
            dimension_semantics=("parallel",),
        ),
        cost_estimate=cost,
    )(xT, params)

    return jnp.transpose(yT[:, :B])                   # (B, out_f)


def init_params(key, in_features=12, h1=8, h2=8, out_features=2):
    """PyTorch nn.Linear default init: U(-1/sqrt(fan_in), 1/sqrt(fan_in)).
    Weights are stored in PyTorch layout (out_features, in_features)."""
    def linear(k, fan_in, fan_out):
        kw, kb = jax.random.split(k)
        bound = 1.0 / jnp.sqrt(fan_in)
        w = jax.random.uniform(kw, (fan_out, fan_in), jnp.float32, -bound, bound)
        b = jax.random.uniform(kb, (fan_out,), jnp.float32, -bound, bound)
        return w, b

    k1, k2, k3 = jax.random.split(key, 3)
    w1, b1 = linear(k1, in_features, h1)
    w2, b2 = linear(k2, h1, h2)
    w3, b3 = linear(k3, h2, out_features)
    return w1, b1, w2, b2, w3, b3


def reference_forward(x, w1, b1, w2, b2, w3, b3):
    h = jnp.maximum(x @ w1.T + b1, 0.0)
    h = jnp.maximum(h @ w2.T + b2, 0.0)
    return h @ w3.T + b3


if __name__ == "__main__":
    key = jax.random.PRNGKey(0)
    kx, kx2, kp = jax.random.split(key, 3)

    in_features, h1, h2, out_features = 12, 8, 8, 2
    params = init_params(kp, in_features, h1, h2, out_features)

    # Small shape implied by the module (batch of feature vectors).
    batch = 8
    x = jax.random.normal(kx, (batch, in_features), jnp.float32)
    y = mlp_forward(x, *params)
    jax.block_until_ready(y)
    y_ref = reference_forward(x, *params)
    assert y.shape == (batch, out_features)
    assert jnp.allclose(y, y_ref, atol=1e-5, rtol=1e-5)

    # Also exercise the multi-tile / padded path (grid > 1, B not tile-aligned).
    batch2 = 1100
    x2 = jax.random.normal(kx2, (batch2, in_features), jnp.float32)
    y2 = mlp_forward(x2, *params, block_b=128)   # forces 9 grid steps + padding
    jax.block_until_ready(y2)
    y2_ref = reference_forward(x2, *params)
    assert y2.shape == (batch2, out_features)
    assert jnp.allclose(y2, y2_ref, atol=1e-5, rtol=1e-5)

    # And the default (large-tile) path on the same data.
    y3 = mlp_forward(x2, *params)
    jax.block_until_ready(y3)
    assert jnp.allclose(y3, y2_ref, atol=1e-5, rtol=1e-5)

    print("KERNEL_OK")
</pallas_src>

<mosaic_0001>
module attributes {stable_mosaic.version = 11 : i64} {
  func.func @kernel(%arg0: i32, %arg1: memref<12x128xf32, #tpu.memory_space<vmem>>, %arg2: memref<8x31xf32, #tpu.memory_space<vmem>>, %arg3: memref<2x128xf32, #tpu.memory_space<vmem>>) attributes {dimension_semantics = [#tpu.dimension_semantics<parallel>], iteration_bounds = array<i64: 1>, scalar_prefetch = 0 : i64, scratch_operands = 0 : i64, tpu.core_type = #tpu.core_type<tc>, window_params = [{transform_indices = @transform_0, window_bounds = array<i64: 12, 128>}, {pipeline_mode = #tpu.pipeline_mode<synchronous>, transform_indices = @transform_1, window_bounds = array<i64: 8, 31>}, {transform_indices = @transform_2, window_bounds = array<i64: 2, 128>}]} {
    %c0 = arith.constant 0 : index
    %c0_0 = arith.constant 0 : index
    %0 = vector.load %arg2[%c0, %c0_0] : memref<8x31xf32, #tpu.memory_space<vmem>>, vector<8x31xf32>
    %1 = vector.extract_strided_slice %0 {offsets = [0, 0], sizes = [8, 12], strides = [1, 1]} : vector<8x31xf32> to vector<8x12xf32>
    %2 = vector.extract_strided_slice %0 {offsets = [0, 12], sizes = [8, 8], strides = [1, 1]} : vector<8x31xf32> to vector<8x8xf32>
    %3 = vector.extract_strided_slice %0 {offsets = [0, 20], sizes = [2, 8], strides = [1, 1]} : vector<8x31xf32> to vector<2x8xf32>
    %4 = vector.extract_strided_slice %0 {offsets = [0, 28], sizes = [8, 1], strides = [1, 1]} : vector<8x31xf32> to vector<8x1xf32>
    %5 = vector.extract_strided_slice %0 {offsets = [0, 29], sizes = [8, 1], strides = [1, 1]} : vector<8x31xf32> to vector<8x1xf32>
    %6 = vector.extract_strided_slice %0 {offsets = [0, 30], sizes = [2, 1], strides = [1, 1]} : vector<8x31xf32> to vector<2x1xf32>
    %c0_1 = arith.constant 0 : index
    %c0_2 = arith.constant 0 : index
    %7 = vector.load %arg1[%c0_1, %c0_2] : memref<12x128xf32, #tpu.memory_space<vmem>>, vector<12x128xf32>
    %cst = arith.constant dense<0.000000e+00> : vector<8x128xf32>
    %8 = tpu.matmul %1, %7, %cst {dimension_numbers = #tpu.dot_dimension_numbers<[1], [0], [0], [1], [0, 0, 1, 1], [], []>} : vector<8x12xf32>, vector<12x128xf32>, vector<8x128xf32> -> vector<8x128xf32>
    %9 = vector.broadcast %4 : vector<8x1xf32> to vector<8x128xf32>
    %10 = arith.addf %8, %9 : vector<8x128xf32>
    %cst_3 = arith.constant 0.000000e+00 : f32
    %11 = vector.broadcast %cst_3 : f32 to vector<8x128xf32>
    %12 = arith.maximumf %10, %11 : vector<8x128xf32>
    %cst_4 = arith.constant dense<0.000000e+00> : vector<8x128xf32>
    %13 = tpu.matmul %2, %12, %cst_4 {dimension_numbers = #tpu.dot_dimension_numbers<[1], [0], [0], [1], [0, 0, 1, 1], [], []>} : vector<8x8xf32>, vector<8x128xf32>, vector<8x128xf32> -> vector<8x128xf32>
    %14 = vector.broadcast %5 : vector<8x1xf32> to vector<8x128xf32>
    %15 = arith.addf %13, %14 : vector<8x128xf32>
    %cst_5 = arith.constant 0.000000e+00 : f32
    %16 = vector.broadcast %cst_5 : f32 to vector<8x128xf32>
    %17 = arith.maximumf %15, %16 : vector<8x128xf32>
    %cst_6 = arith.constant dense<0.000000e+00> : vector<2x128xf32>
    %18 = tpu.matmul %3, %17, %cst_6 {dimension_numbers = #tpu.dot_dimension_numbers<[1], [0], [0], [1], [0, 0, 1, 1], [], []>} : vector<2x8xf32>, vector<8x128xf32>, vector<2x128xf32> -> vector<2x128xf32>
    %19 = vector.broadcast %6 : vector<2x1xf32> to vector<2x128xf32>
    %20 = arith.addf %18, %19 : vector<2x128xf32>
    %c0_7 = arith.constant 0 : index
    %c0_8 = arith.constant 0 : index
    %21 = vector.load %arg3[%c0_7, %c0_8] : memref<2x128xf32, #tpu.memory_space<vmem>>, vector<2x128xf32>
    tpu.vector_store %arg3[%c0_7, %c0_8], %20 {strides = array<i32>} : memref<2x128xf32, #tpu.memory_space<vmem>>, vector<2x128xf32>,
    return
  }
  func.func @transform_0(%arg0: i32) -> (i32, i32) {
    %c0_i32 = arith.constant 0 : i32
    %c0_i32_0 = arith.constant 0 : i32
    return %c0_i32, %arg0 : i32, i32
  }
  func.func @transform_1(%arg0: i32) -> (i32, i32) {
    %c0_i32 = arith.constant 0 : i32
    %c0_i32_0 = arith.constant 0 : i32
    %c0_i32_1 = arith.constant 0 : i32
    return %c0_i32, %c0_i32_0 : i32, i32
  }
  func.func @transform_2(%arg0: i32) -> (i32, i32) {
    %c0_i32 = arith.constant 0 : i32
    %c0_i32_0 = arith.constant 0 : i32
    return %c0_i32, %arg0 : i32, i32
  }
}

</mosaic_0001>

<llo_original>
// kernel: tpu_custom_call.1
$region0: #{tpu_custom_call.1}
  #allocation0 [shape = 'u32[]', space=smem, size = 0x4, offset = 0x4, fixed_abs, tag = 'smem constant byte address 0x4 - core index']
  #allocation1 [shape = 'u32[144,128]{1,0:T(1,128)}', space=vmem, size = 0x12000, scoped, tag = 'internal scratch']
  %s0 = inlined_call_operand.hbm [shape: f32[12,128], index: 0, kind: input, shape index: {}]
  %s1 = inlined_call_operand.hbm [shape: f32[8,31], index: 1, kind: input, shape index: {}]
  %s2 = inlined_call_operand.hbm [shape: f32[2,128], index: 2, kind: output, shape index: {}]
  %s3 = sld [smem:[#allocation0]]
  $region26: #{tpu_custom_call.1} parent=0
    _
  %s5 = ssub.s32 1, %s3
  %s6 = scalar_select 0, %s5, %s3
  $region1: #{tpu_custom_call.1} parent=0
    #allocation2 [shape = 'u8[8192]{0}', space=vmem, size = 0x2000, scoped, tag = 'input window, operand 0, single buffered']
    #allocation3 [shape = 's32[1]{0}', space=sflag, size = 0x4, scoped, tag = 'scoped memory for tpu_custom_call.1']
    #allocation4 [shape = 's32[1]{0}', space=sflag, size = 0x4, scoped, tag = 'scoped memory for tpu_custom_call.1']
    #allocation5 [shape = 'u8[4096]{0}', space=vmem, size = 0x1000, scoped, tag = 'input window, operand 1, single buffered']
    #allocation6 [shape = 's32[1]{0}', space=sflag, size = 0x4, scoped, tag = 'scoped memory for tpu_custom_call.1']
    #allocation7 [shape = 'u8[1024]{0}', space=vmem, size = 0x400, scoped, tag = 'output window, operand 0, single buffered']
    %7 = vsyncpa [#allocation3], 0
    %8 = vsyncpa [#allocation6], 0
    %9 = vsyncpa [#allocation4], 0
    // Predicated region
    $region2: #{tpu_custom_call.1} parent=1 // pred_check
      _
    $region3: #{tpu_custom_call.1} parent=1 // pred_check_branch
      %11 = sbr.rel (0) target = $region5
    $region4: #{tpu_custom_call.1} parent=1 // pred_region
      %s13 = ssub.s32 256, 256
      %14 = vsyncadd [#allocation3], %s13
      %s15 = sshll.u32 [#allocation2], 4
      %s16 = int_to_ptr.vmem [resolvable:$true] %s15
      %21 = dma.hbm_to_vmem [thread:$0]  %s0, 256, %s16, [#allocation3], 128, 128, 8
    $region5: #{tpu_custom_call.1} parent=1 // pred_fallthru
      _
    // Predicated region
    $region6: #{tpu_custom_call.1} parent=1 // pred_check
      _
    $region7: #{tpu_custom_call.1} parent=1 // pred_check_branch
      %23 = sbr.rel (0) target = $region9
    $region8: #{tpu_custom_call.1} parent=1 // pred_region
      %s25 = ssub.s32 128, 128
      %26 = vsyncadd [#allocation6], %s25
      %s28 = sshll.u32 [#allocation5], 4
      %s29 = int_to_ptr.vmem [resolvable:$true] %s28
      %31 = dma.hbm_to_vmem [thread:$0]  %s1, 128, %s29, [#allocation6]
    $region9: #{tpu_custom_call.1} parent=1 // pred_fallthru
      _
    // Predicated region
    $region10: #{tpu_custom_call.1} parent=1 // pred_check
      _
    $region11: #{tpu_custom_call.1} parent=1 // pred_check_branch
      %33 = sbr.rel (0) target = $region13
    $region12: #{tpu_custom_call.1} parent=1 // pred_region
      %34 = dma.done [#allocation3], 256
    $region13: #{tpu_custom_call.1} parent=1 // pred_fallthru
      _
    // Predicated region
    $region14: #{tpu_custom_call.1} parent=1 // pred_check
      _
    $region15: #{tpu_custom_call.1} parent=1 // pred_check_branch
      %36 = sbr.rel (0) target = $region17
    $region16: #{tpu_custom_call.1} parent=1 // pred_region
      %37 = dma.done [#allocation6], 128
    $region17: #{tpu_custom_call.1} parent=1 // pred_fallthru
      _
    %v38 = vld [vmem:[#allocation5] sm:$0xff]
    %v39 = vld [vmem:[#allocation2] sm:$0xff]
    %v40 = vld [vmem:[#allocation2 + $0x8] sm:$0xf]
    %42 = vset.pattern.permute.xlu0 28
    %43 = vperm.xlu0 %42, %v38
    %v44 = vpop.permute.xlu0 %43
    %vm46 = vcmask 97280
    %v47 = vsel %vm46, %v38, 0
    %vm49 = vcmask 1043456
    %v51 = vsel %vm49, %v40, 0
    %53 = vmatprep.subr.mxu0 0.0
    %54 = vmatpush1.msra.mxu0 0.0
    %55 = vmatprep.subr.mxu0 0.0
    %56 = vmatpush1.msra.mxu0 0.0
    %57 = vmatprep.subr.mxu0 0.0
    %58 = vmatpush1.msra.mxu0 0.0
    %59 = vmatprep.subr.mxu0 0.0
    %60 = vmatpush1.msra.mxu0 0.0
    %61 = vmatprep.subr.mxu0 0.0
    %62 = vmatpush1.msra.mxu0 0.0
    %63 = vmatprep.subr.mxu0 0.0
    %64 = vmatpush1.msra.mxu0 0.0
    %65 = vmatprep.subr.mxu0 0.0
    %66 = vmatpush1.msra.mxu0 0.0
    %67 = vmatprep.subr.mxu0 0.0
    %68 = vmatpush1.msra.mxu0 0.0
    %69 = vmatprep.subr.mxu0 0.0
    %70 = vmatpush1.msra.mxu0 0.0
    %71 = vmatprep.subr.mxu0 0.0
    %72 = vmatpush1.msra.mxu0 0.0
    %73 = vmatprep.subr.mxu0 0.0
    %74 = vmatpush1.msra.mxu0 0.0
    %75 = vmatprep.subr.mxu0 0.0
    %76 = vmatpush1.msra.mxu0 0.0
    %77 = vmatprep.subr.mxu0 0.0
    %78 = vmatpush1.msra.mxu0 0.0
    %79 = vmatprep.subr.mxu0 0.0
    %80 = vmatpush1.msra.mxu0 0.0
    %81 = vmatprep.subr.mxu0 0.0
    %82 = vmatpush1.msra.mxu0 %v51
    %83 = vmatprep.subr.mxu0 0.0
    %84 = vmatpush1.msra.mxu0 %v39
    %85 = vmatprep.subr.mxu0 0.0
    %86 = vmatpush2.msra.mxu0 0.0
    %87 = vmatprep.subr.mxu0 0.0
    %88 = vmatpush2.msra.mxu0 0.0
    %89 = vmatprep.subr.mxu0 0.0
    %90 = vmatpush2.msra.mxu0 0.0
    %91 = vmatprep.subr.mxu0 0.0
    %92 = vmatpush2.msra.mxu0 0.0
    %93 = vmatprep.subr.mxu0 0.0
    %94 = vmatpush2.msra.mxu0 0.0
    %95 = vmatprep.subr.mxu0 0.0
    %96 = vmatpush2.msra.mxu0 0.0
    %97 = vmatprep.subr.mxu0 0.0
    %98 = vmatpush2.msra.mxu0 0.0
    %99 = vmatprep.subr.mxu0 0.0
    %100 = vmatpush2.msra.mxu0 0.0
    %101 = vmatprep.subr.mxu0 0.0
    %102 = vmatpush2.msra.mxu0 0.0
    %103 = vmatprep.subr.mxu0 0.0
    %104 = vmatpush2.msra.mxu0 0.0
    %105 = vmatprep.subr.mxu0 0.0
    %106 = vmatpush2.msra.mxu0 0.0
    %107 = vmatprep.subr.mxu0 0.0
    %108 = vmatpush2.msra.mxu0 0.0
    %109 = vmatprep.subr.mxu0 0.0
    %110 = vmatpush2.msra.mxu0 0.0
    %111 = vmatprep.subr.mxu0 0.0
    %112 = vmatpush2.msra.mxu0 0.0
    %113 = vmatprep.subr.mxu0 0.0
    %114 = vmatpush2.msra.mxu0 0.0
    %115 = vmatprep.subr.mxu0 0.0
    %116 = vmatpush2.msra.mxu0 0.0
    %117 = vmatprep.mubr.f32.mxu0 0.0
    %118 = vmatmul.mubr.f32.gmra.mxu0 %v47
    %v119 = vpop.f32.mrf.mxu0
    %v120 = vadd.f32 %v44, %v119
    %v121 = vpop.f32.mrf.mxu0
    %122 = vdwg.mxu0
    %v123 = vmax.f32 %v120, 0.0
    %124 = vset.pattern.permute.xlu0 29
    %125 = vperm.xlu0 %124, %v38
    %v126 = vpop.permute.xlu0 %125
    %128 = vrot.lane.b32.xlu0 %v38, 116
    %v129 = vpop.permute.xlu0 %128
    %vm130 = vcmask 64512
    %v131 = vsel %vm130, %v129, 0
    %133 = vmatprep.subr.mxu0 0.0
    %134 = vmatpush1.msra.mxu0 0.0
    %135 = vmatprep.subr.mxu0 0.0
    %136 = vmatpush1.msra.mxu0 0.0
    %137 = vmatprep.subr.mxu0 0.0
    %138 = vmatpush1.msra.mxu0 0.0
    %139 = vmatprep.subr.mxu0 0.0
    %140 = vmatpush1.msra.mxu0 0.0
    %141 = vmatprep.subr.mxu0 0.0
    %142 = vmatpush1.msra.mxu0 0.0
    %143 = vmatprep.subr.mxu0 0.0
    %144 = vmatpush1.msra.mxu0 0.0
    %145 = vmatprep.subr.mxu0 0.0
    %146 = vmatpush1.msra.mxu0 0.0
    %147 = vmatprep.subr.mxu0 0.0
    %148 = vmatpush1.msra.mxu0 0.0
    %149 = vmatprep.subr.mxu0 0.0
    %150 = vmatpush1.msra.mxu0 0.0
    %151 = vmatprep.subr.mxu0 0.0
    %152 = vmatpush1.msra.mxu0 0.0
    %153 = vmatprep.subr.mxu0 0.0
    %154 = vmatpush1.msra.mxu0 0.0
    %155 = vmatprep.subr.mxu0 0.0
    %156 = vmatpush1.msra.mxu0 0.0
    %157 = vmatprep.subr.mxu0 0.0
    %158 = vmatpush1.msra.mxu0 0.0
    %159 = vmatprep.subr.mxu0 0.0
    %160 = vmatpush1.msra.mxu0 0.0
    %161 = vmatprep.subr.mxu0 0.0
    %162 = vmatpush1.msra.mxu0 0.0
    %163 = vmatprep.subr.mxu0 0.0
    %164 = vmatpush1.msra.mxu0 %v123
    %165 = vmatprep.subr.mxu0 0.0
    %166 = vmatpush2.msra.mxu0 0.0
    %167 = vmatprep.subr.mxu0 0.0
    %168 = vmatpush2.msra.mxu0 0.0
    %169 = vmatprep.subr.mxu0 0.0
    %170 = vmatpush2.msra.mxu0 0.0
    %171 = vmatprep.subr.mxu0 0.0
    %172 = vmatpush2.msra.mxu0 0.0
    %173 = vmatprep.subr.mxu0 0.0
    %174 = vmatpush2.msra.mxu0 0.0
    %175 = vmatprep.subr.mxu0 0.0
    %176 = vmatpush2.msra.mxu0 0.0
    %177 = vmatprep.subr.mxu0 0.0
    %178 = vmatpush2.msra.mxu0 0.0
    %179 = vmatprep.subr.mxu0 0.0
    %180 = vmatpush2.msra.mxu0 0.0
    %181 = vmatprep.subr.mxu0 0.0
    %182 = vmatpush2.msra.mxu0 0.0
    %183 = vmatprep.subr.mxu0 0.0
    %184 = vmatpush2.msra.mxu0 0.0
    %185 = vmatprep.subr.mxu0 0.0
    %186 = vmatpush2.msra.mxu0 0.0
    %187 = vmatprep.subr.mxu0 0.0
    %188 = vmatpush2.msra.mxu0 0.0
    %189 = vmatprep.subr.mxu0 0.0
    %190 = vmatpush2.msra.mxu0 0.0
    %191 = vmatprep.subr.mxu0 0.0
    %192 = vmatpush2.msra.mxu0 0.0
    %193 = vmatprep.subr.mxu0 0.0
    %194 = vmatpush2.msra.mxu0 0.0
    %195 = vmatprep.subr.mxu0 0.0
    %196 = vmatpush2.msra.mxu0 0.0
    %197 = vmatprep.mubr.f32.mxu0 0.0
    %198 = vmatmul.mubr.f32.gmra.mxu0 %v131
    %v199 = vpop.f32.mrf.mxu0
    %v200 = vadd.f32 %v126, %v199
    %v201 = vpop.f32.mrf.mxu0
    %202 = vdwg.mxu0
    %v203 = vmax.f32 %v200, 0.0
    %204 = vset.pattern.permute.xlu0 30
    %205 = vperm.xlu0 %204, %v38
    %v206 = vpop.permute.xlu0 %205
    %208 = vrot.lane.b32.xlu0 %v38, 108
    %v209 = vpop.permute.xlu0 %208
    %v210 = vsel %vm130, %v209, 0
    %212 = vmatprep.subr.mxu0 0.0
    %213 = vmatpush1.msra.mxu0 0.0
    %214 = vmatprep.subr.mxu0 0.0
    %215 = vmatpush1.msra.mxu0 0.0
    %216 = vmatprep.subr.mxu0 0.0
    %217 = vmatpush1.msra.mxu0 0.0
    %218 = vmatprep.subr.mxu0 0.0
    %219 = vmatpush1.msra.mxu0 0.0
    %220 = vmatprep.subr.mxu0 0.0
    %221 = vmatpush1.msra.mxu0 0.0
    %222 = vmatprep.subr.mxu0 0.0
    %223 = vmatpush1.msra.mxu0 0.0
    %224 = vmatprep.subr.mxu0 0.0
    %225 = vmatpush1.msra.mxu0 0.0
    %226 = vmatprep.subr.mxu0 0.0
    %227 = vmatpush1.msra.mxu0 0.0
    %228 = vmatprep.subr.mxu0 0.0
    %229 = vmatpush1.msra.mxu0 0.0
    %230 = vmatprep.subr.mxu0 0.0
    %231 = vmatpush1.msra.mxu0 0.0
    %232 = vmatprep.subr.mxu0 0.0
    %233 = vmatpush1.msra.mxu0 0.0
    %234 = vmatprep.subr.mxu0 0.0
    %235 = vmatpush1.msra.mxu0 0.0
    %236 = vmatprep.subr.mxu0 0.0
    %237 = vmatpush1.msra.mxu0 0.0
    %238 = vmatprep.subr.mxu0 0.0
    %239 = vmatpush1.msra.mxu0 0.0
    %240 = vmatprep.subr.mxu0 0.0
    %241 = vmatpush1.msra.mxu0 0.0
    %242 = vmatprep.subr.mxu0 0.0
    %243 = vmatpush1.msra.mxu0 %v203
    %244 = vmatprep.subr.mxu0 0.0
    %245 = vmatpush2.msra.mxu0 0.0
    %246 = vmatprep.subr.mxu0 0.0
    %247 = vmatpush2.msra.mxu0 0.0
    %248 = vmatprep.subr.mxu0 0.0
    %249 = vmatpush2.msra.mxu0 0.0
    %250 = vmatprep.subr.mxu0 0.0
    %251 = vmatpush2.msra.mxu0 0.0
    %252 = vmatprep.subr.mxu0 0.0
    %253 = vmatpush2.msra.mxu0 0.0
    %254 = vmatprep.subr.mxu0 0.0
    %255 = vmatpush2.msra.mxu0 0.0
    %256 = vmatprep.subr.mxu0 0.0
    %257 = vmatpush2.msra.mxu0 0.0
    %258 = vmatprep.subr.mxu0 0.0
    %259 = vmatpush2.msra.mxu0 0.0
    %260 = vmatprep.subr.mxu0 0.0
    %261 = vmatpush2.msra.mxu0 0.0
    %262 = vmatprep.subr.mxu0 0.0
    %263 = vmatpush2.msra.mxu0 0.0
    %264 = vmatprep.subr.mxu0 0.0
    %265 = vmatpush2.msra.mxu0 0.0
    %266 = vmatprep.subr.mxu0 0.0
    %267 = vmatpush2.msra.mxu0 0.0
    %268 = vmatprep.subr.mxu0 0.0
    %269 = vmatpush2.msra.mxu0 0.0
    %270 = vmatprep.subr.mxu0 0.0
    %271 = vmatpush2.msra.mxu0 0.0
    %272 = vmatprep.subr.mxu0 0.0
    %273 = vmatpush2.msra.mxu0 0.0
    %274 = vmatprep.subr.mxu0 0.0
    %275 = vmatpush2.msra.mxu0 0.0
    %276 = vmatprep.mubr.f32.mxu0 0.0
    %277 = vmatmul.mubr.f32.gmra.mxu0 %v210
    %v278 = vpop.f32.mrf.mxu0
    %v279 = vadd.f32 %v206, %v278
    %v280 = vpop.f32.mrf.mxu0
    %281 = vdwg.mxu0
    %282 = vst [vmem:[#allocation7] sm:$0x3] %v279
    // Predicated region
    $region18: #{tpu_custom_call.1} parent=1 // pred_check
      _
    $region19: #{tpu_custom_call.1} parent=1 // pred_check_branch
      %284 = sbr.rel (0) target = $region21
    $region20: #{tpu_custom_call.1} parent=1 // pred_region
      %s286 = ssub.s32 32, 32
      %287 = vsyncadd [#allocation4], %s286
      %s289 = sshll.u32 [#allocation7], 4
      %s290 = int_to_ptr.vmem [resolvable:$true] %s289
      %292 = dma.vmem_to_hbm [thread:$0]  %s290, 32, %s2, [#allocation4]
    $region21: #{tpu_custom_call.1} parent=1 // pred_fallthru
      _
    // Predicated region
    $region22: #{tpu_custom_call.1} parent=1 // pred_check
      _
    $region23: #{tpu_custom_call.1} parent=1 // pred_check_branch
      %294 = sbr.rel (0) target = $region25
    $region24: #{tpu_custom_call.1} parent=1 // pred_region
      %295 = dma.done [#allocation4], 32
    $region25: #{tpu_custom_call.1} parent=1 // pred_fallthru
      _
    %296 = vsyncpa [#allocation3], 1
    %297 = vsyncpa [#allocation6], 1
    %298 = vsyncpa [#allocation4], 1

</llo_original>
